<compile_context>
chip_gen: v6e
topology: v6e:2x2x1
jax: 0.10.0
libtpu: 0.0.40
codegen_flags: <defaults>
</compile_context>

<pallas_src>
import functools

import jax
import jax.numpy as jnp
from jax import lax
from jax.experimental import pallas as pl
from jax.experimental.pallas import tpu as pltpu

_INV_SQRT2 = 0.7071067811865476  # 1/sqrt(2) as a compile-time constant (mul, not divide)


def _activate_kernel(x_ref, o_ref, *, activate_fun, native_scale):
    x = x_ref[...]
    if activate_fun == "relu":
        # Stay in the input dtype; no extra casts.
        o_ref[...] = jnp.maximum(x, jnp.zeros_like(x))
        return
    # "gelu": exact erf-based gelu  x * 0.5 * (1 + erf(x / sqrt(2)))
    if native_scale and x.dtype != jnp.float32:
        # v6e/v7x + 16-bit input: keep the erf argument/result in f32 (safe
        # lowering, matches torch.erf numerics) but do the cheap scaling in
        # the native dtype so the whole expression does not run on f32-split
        # vreg pairs.
        # TODO(synk): a full-bf16 erf (or tanh-approx gelu) would cut more
        # VALU ops on v6e/v7x but changes numerics vs torch.erf.
        t = lax.erf(x.astype(jnp.float32) * _INV_SQRT2).astype(x.dtype)
        o_ref[...] = x * 0.5 * (1.0 + t)
    else:
        xf = x.astype(jnp.float32)
        y = xf * 0.5 * (1.0 + lax.erf(xf * _INV_SQRT2))
        o_ref[...] = y.astype(o_ref.dtype)


def _plain_activation(x, kind):
    """Fused-XLA fallback (1x HBM traffic) for shapes the kernel can't tile."""
    if kind == "relu":
        return jnp.maximum(x, jnp.zeros_like(x))
    xf = x.astype(jnp.float32)
    return (xf * 0.5 * (1.0 + lax.erf(xf * _INV_SQRT2))).astype(x.dtype)


def _tpu_config():
    """(target_block_bytes, tensorcores_per_chip, v6_or_newer) from device kind."""
    kind = ""
    try:
        kind = jax.devices()[0].device_kind.lower()
    except Exception:
        pass
    if "7" in kind:        # v7x: 2 TCs/chip, ~3.2 TB/s HBM, 64 MiB VMEM
        return 6 << 20, 2, True
    if "v6" in kind:       # v6e: ~1.4 TB/s HBM, 128 MiB VMEM
        return 4 << 20, 1, True
    return 2 << 20, 1, False   # v5e/v5p/v4/unknown: conservative block size


def activate_fun(x, kind, *, target_block_bytes=None):
    """Elementwise activation via a Pallas TPU kernel.

    x: any-shaped array (e.g. NCHW). Returns same shape/dtype.
    kind: 'relu' or 'gelu'.
    """
    if kind not in ("relu", "gelu"):
        raise ValueError(f"unknown activate_fun: {kind}")

    orig_shape = x.shape
    orig_dtype = x.dtype
    total = x.size
    if total == 0:
        return x
    itemsize = jnp.dtype(orig_dtype).itemsize
    # Native sublane packing: 8 rows for 32-bit, 16 for bf16/f16, 32 for int8/fp8.
    packing = max(8, 32 // max(itemsize, 1))

    block_bytes_default, num_tc, v6_or_newer = _tpu_config()
    if target_block_bytes is None:
        target_block_bytes = block_bytes_default

    # ---- lane-dense 2D factorization (no pad/slice copies) ----
    lanes = None
    for cand in (1024, 512, 256, 128):        # wide lanes => fewer DMA descriptors
        if total % cand == 0 and total // cand >= packing:
            lanes = cand
            break
    if lanes is None:
        for cand in (1024, 512, 256, 128):    # small-but-divisible tensors
            if total % cand == 0:
                lanes = cand
                break
    if lanes is None:
        # No multiple-of-128 factorization.  The old pad+slice path cost ~3x
        # HBM traffic around an already mem-bound kernel; the fused XLA
        # elementwise op is already at the 1x-traffic roofline for these
        # (rare, small) shapes, so use it instead.
        return _plain_activation(x, kind)

    rows = total // lanes
    x2d = jnp.reshape(x, (rows, lanes))       # contiguous collapse: free

    # ---- tile selection: big blocks, >=2 grid steps when possible ----
    if rows <= packing:
        tr = rows                             # full-extent block (tiny tensor)
    else:
        tr = (target_block_bytes // (lanes * itemsize)) // packing * packing
        tr = max(tr, packing)
        # Guarantee >= 2 grid steps (>= 4 on v7x so both TensorCores get work
        # under dimension_semantics=("parallel",)) whenever rows allows.
        min_steps = max(2, 2 * num_tc)
        if rows // min_steps >= packing:
            tr = min(tr, (rows // min_steps) // packing * packing)
        rows_up = ((rows + packing - 1) // packing) * packing
        tr = min(tr, rows_up)                 # ragged last block is masked
    grid = (pl.cdiv(rows, tr),)

    block_bytes = tr * lanes * itemsize
    # Scoped-VMEM budget: 2 buffers x (in block + out block) + headroom.
    # Raising the limit is safe on every generation (v5e/v6e physical VMEM is
    # 128 MiB, v7x is 64 MiB); cap at 48 MiB to stay inside v7x.
    vmem_limit = int(min(max(4 * block_bytes + (8 << 20), 32 << 20), 48 << 20))

    native_scale = bool(v6_or_newer and itemsize == 2 and kind == "gelu")
    kernel = functools.partial(
        _activate_kernel, activate_fun=kind, native_scale=native_scale)

    cost = pl.CostEstimate(
        flops=int(total * (1 if kind == "relu" else 6)),
        transcendentals=int(total if kind == "gelu" else 0),
        bytes_accessed=int(2 * total * itemsize),
    )

    out2d = pl.pallas_call(
        kernel,
        out_shape=jax.ShapeDtypeStruct((rows, lanes), orig_dtype),
        grid_spec=pltpu.PrefetchScalarGridSpec(
            num_scalar_prefetch=0,
            grid=grid,
            in_specs=[pl.BlockSpec((tr, lanes), lambda i: (i, 0))],
            out_specs=pl.BlockSpec((tr, lanes), lambda i: (i, 0)),
        ),
        compiler_params=pltpu.CompilerParams(
            dimension_semantics=("parallel",),
            vmem_limit_bytes=vmem_limit,
        ),
        cost_estimate=cost,
    )(x2d)

    return jnp.reshape(out2d, orig_shape)


def _gelu_ref(x):
    xf = x.astype(jnp.float32)
    return (xf * 0.5 * (1.0 + lax.erf(xf * _INV_SQRT2))).astype(x.dtype)


if __name__ == "__main__":
    key = jax.random.PRNGKey(0)
    k1, k2, k3, k4, k5 = jax.random.split(key, 5)

    # NCHW input, as in the PyTorch convention of the surrounding model.
    x = jax.random.normal(k1, (2, 4, 16, 16), dtype=jnp.float32)

    # gelu path (module's default usage)
    y_gelu = jax.block_until_ready(activate_fun(x, "gelu"))
    ref_gelu = _gelu_ref(x)
    assert y_gelu.shape == x.shape and y_gelu.dtype == x.dtype
    assert jnp.max(jnp.abs(y_gelu - ref_gelu)) < 1e-5

    # relu path
    y_relu = jax.block_until_ready(activate_fun(x, "relu"))
    ref_relu = jnp.maximum(x, 0.0)
    assert y_relu.shape == x.shape and y_relu.dtype == x.dtype
    assert jnp.max(jnp.abs(y_relu - ref_relu)) == 0.0

    # Ragged grid: rows (45) not a multiple of the row tile.
    x2 = jax.random.normal(k2, (3, 5, 24, 128), dtype=jnp.float32)
    y2 = jax.block_until_ready(activate_fun(x2, "gelu"))
    assert jnp.max(jnp.abs(y2 - _gelu_ref(x2))) < 1e-5

    # Multi-step grid (several blocks -> exercises pipelining / megacore split).
    x3 = jax.random.normal(k3, (4, 32, 32, 128), dtype=jnp.float32)
    y3 = jax.block_until_ready(activate_fun(x3, "gelu"))
    assert jnp.max(jnp.abs(y3 - _gelu_ref(x3))) < 1e-5

    # bf16 gelu (mixed-precision scaling path on v6e/v7x, full f32 elsewhere).
    x4 = jax.random.normal(k4, (4, 8, 16, 128), dtype=jnp.bfloat16)
    y4 = jax.block_until_ready(activate_fun(x4, "gelu"))
    ref4 = _gelu_ref(x4)
    assert y4.shape == x4.shape and y4.dtype == jnp.bfloat16
    assert jnp.max(jnp.abs(y4.astype(jnp.float32) - ref4.astype(jnp.float32))) < 0.08

    # Awkward element count with no multiple-of-128 factorization: handled by
    # the fused-XLA fallback (1x HBM traffic), not the old pad+slice dance.
    x5 = jax.random.normal(k5, (3, 5, 7, 9), dtype=jnp.float32)
    y5 = jax.block_until_ready(activate_fun(x5, "gelu"))
    assert y5.shape == x5.shape
    assert jnp.max(jnp.abs(y5 - _gelu_ref(x5))) < 1e-5

    print("KERNEL_OK")
</pallas_src>

<mosaic_0001>
module attributes {stable_mosaic.version = 11 : i64} {
  func.func @_activate_kernel(%arg0: i32, %arg1: memref<8x256xf32, #tpu.memory_space<vmem>>, %arg2: memref<8x256xf32, #tpu.memory_space<vmem>>) attributes {dimension_semantics = [#tpu.dimension_semantics<parallel>], iteration_bounds = array<i64: 1>, scalar_prefetch = 0 : i64, scratch_operands = 0 : i64, tpu.core_type = #tpu.core_type<tc>, window_params = [{transform_indices = @transform_0, window_bounds = array<i64: 8, 256>}, {transform_indices = @transform_1, window_bounds = array<i64: 8, 256>}]} {
    %c0 = arith.constant 0 : index
    %c0_0 = arith.constant 0 : index
    %0 = vector.load %arg1[%c0, %c0_0] : memref<8x256xf32, #tpu.memory_space<vmem>>, vector<8x256xf32>
    %cst = arith.constant 5.000000e-01 : f32
    %1 = vector.broadcast %cst : f32 to vector<8x256xf32>
    %2 = arith.mulf %0, %1 : vector<8x256xf32>
    %cst_1 = arith.constant 0.707106769 : f32
    %3 = vector.broadcast %cst_1 : f32 to vector<8x256xf32>
    %4 = arith.mulf %0, %3 : vector<8x256xf32>
    %5 = math.erf %4 : vector<8x256xf32>
    %cst_2 = arith.constant 1.000000e+00 : f32
    %6 = vector.broadcast %cst_2 : f32 to vector<8x256xf32>
    %7 = arith.addf %6, %5 : vector<8x256xf32>
    %8 = arith.mulf %2, %7 : vector<8x256xf32>
    %c0_3 = arith.constant 0 : index
    %c0_4 = arith.constant 0 : index
    %9 = vector.load %arg2[%c0_3, %c0_4] : memref<8x256xf32, #tpu.memory_space<vmem>>, vector<8x256xf32>
    tpu.vector_store %arg2[%c0_3, %c0_4], %8 {strides = array<i32>} : memref<8x256xf32, #tpu.memory_space<vmem>>, vector<8x256xf32>,
    return
  }
  func.func @transform_0(%arg0: i32) -> (i32, i32) {
    %c0_i32 = arith.constant 0 : i32
    %c0_i32_0 = arith.constant 0 : i32
    return %arg0, %c0_i32 : i32, i32
  }
  func.func @transform_1(%arg0: i32) -> (i32, i32) {
    %c0_i32 = arith.constant 0 : i32
    %c0_i32_0 = arith.constant 0 : i32
    return %arg0, %c0_i32 : i32, i32
  }
}

</mosaic_0001>

<llo_original>
// kernel: tpu_custom_call.1
$region0: #{tpu_custom_call.1}
  #allocation0 [shape = 'u32[]', space=smem, size = 0x4, offset = 0x4, fixed_abs, tag = 'smem constant byte address 0x4 - core index']
  #allocation1 [shape = 'u32[144,128]{1,0:T(1,128)}', space=vmem, size = 0x12000, scoped, tag = 'internal scratch']
  %s0 = inlined_call_operand.hbm [shape: f32[8,256], index: 0, kind: input, shape index: {}]
  %s1 = inlined_call_operand.hbm [shape: f32[8,256], index: 1, kind: output, shape index: {}]
  %s2 = sld [smem:[#allocation0]]
  $region18: #{tpu_custom_call.1} parent=0
    _
  %s4 = ssub.s32 1, %s2
  %s5 = scalar_select 0, %s4, %s2
  $region1: #{tpu_custom_call.1} parent=0
    #allocation2 [shape = 'u8[8192]{0}', space=vmem, size = 0x2000, scoped, tag = 'input window, operand 0, single buffered']
    #allocation3 [shape = 's32[1]{0}', space=sflag, size = 0x4, scoped, tag = 'scoped memory for tpu_custom_call.1']
    #allocation4 [shape = 's32[1]{0}', space=sflag, size = 0x4, scoped, tag = 'scoped memory for tpu_custom_call.1']
    #allocation5 [shape = 'u8[8192]{0}', space=vmem, size = 0x2000, scoped, tag = 'output window, operand 0, single buffered']
    %6 = vsyncpa [#allocation3], 0
    %7 = vsyncpa [#allocation4], 0
    // Predicated region
    $region2: #{tpu_custom_call.1} parent=1 // pred_check
      _
    $region3: #{tpu_custom_call.1} parent=1 // pred_check_branch
      %9 = sbr.rel (0) target = $region5
    $region4: #{tpu_custom_call.1} parent=1 // pred_region
      %s11 = ssub.s32 256, 256
      %12 = vsyncadd [#allocation3], %s11
      %s14 = sshll.u32 [#allocation2], 4
      %s15 = int_to_ptr.vmem [resolvable:$true] %s14
      %17 = dma.hbm_to_vmem [thread:$0]  %s0, 256, %s15, [#allocation3]
    $region5: #{tpu_custom_call.1} parent=1 // pred_fallthru
      _
    // Predicated region
    $region6: #{tpu_custom_call.1} parent=1 // pred_check
      _
    $region7: #{tpu_custom_call.1} parent=1 // pred_check_branch
      %19 = sbr.rel (0) target = $region9
    $region8: #{tpu_custom_call.1} parent=1 // pred_region
      %20 = dma.done [#allocation3], 256
    $region9: #{tpu_custom_call.1} parent=1 // pred_fallthru
      _
    %v21 = vld [vmem:[#allocation2] sm:$0xff]
    %v22 = vld [vmem:[#allocation2 + $0x8] sm:$0xff]
    %v23 = vmul.f32 %v21, 0.5
    %v24 = vmul.f32 %v22, 0.5
    %v25 = vmul.f32 %v21, 0.70710677
    %v26 = vmul.f32 %v22, 0.70710677
    %v27 = verf.f32.pop %v25
    %v28 = verf.f32.pop %v26
    %v29 = vadd.f32 %v27, 1.0
    %v30 = vadd.f32 %v28, 1.0
    %v31 = vmul.f32 %v23, %v29
    %v32 = vmul.f32 %v24, %v30
    %33 = vst [vmem:[#allocation5] sm:$0xff] %v31
    %34 = vst [vmem:[#allocation5 + $0x8] sm:$0xff] %v32
    // Predicated region
    $region10: #{tpu_custom_call.1} parent=1 // pred_check
      _
    $region11: #{tpu_custom_call.1} parent=1 // pred_check_branch
      %36 = sbr.rel (0) target = $region13
    $region12: #{tpu_custom_call.1} parent=1 // pred_region
      %s38 = ssub.s32 256, 256
      %39 = vsyncadd [#allocation4], %s38
      %s41 = sshll.u32 [#allocation5], 4
      %s42 = int_to_ptr.vmem [resolvable:$true] %s41
      %44 = dma.vmem_to_hbm [thread:$0]  %s42, 256, %s1, [#allocation4]
    $region13: #{tpu_custom_call.1} parent=1 // pred_fallthru
      _
    // Predicated region
    $region14: #{tpu_custom_call.1} parent=1 // pred_check
      _
    $region15: #{tpu_custom_call.1} parent=1 // pred_check_branch
      %46 = sbr.rel (0) target = $region17
    $region16: #{tpu_custom_call.1} parent=1 // pred_region
      %47 = dma.done [#allocation4], 256
    $region17: #{tpu_custom_call.1} parent=1 // pred_fallthru
      _
    %48 = vsyncpa [#allocation3], 1
    %49 = vsyncpa [#allocation4], 1

</llo_original>
